<compile_context>
chip_gen: v7x
topology: tpu7x:2x2x1
jax: 0.10.0
libtpu: 0.0.40
codegen_flags: <defaults>
</compile_context>

<pallas_src>
import functools

import jax
import jax.numpy as jnp
from jax.experimental import pallas as pl
from jax.experimental.pallas import tpu as pltpu


def _mlp_softmax_kernel(x_ref, w1_ref, b1_ref, w2_ref, b2_ref, w3_ref, b3_ref, o_ref):
    # Shapes (batch on lanes):
    #   x_ref : (n_feature, B_tile)      w*_ref : (n_out, n_in)
    #   b*_ref: (n_out, 1)               o_ref  : (n_output, B_tile)
    x = x_ref[...]                                   # (4, Bt)
    w1 = w1_ref[...]                                 # (20, 4)

    # ---- layer 1 (K=4): unrolled VPU FMAs instead of a tiny-K MXU pass ----
    h1 = w1[:, 0:1] * x[0:1, :]                      # (20, Bt)
    for k in range(1, w1.shape[1]):                  # static unroll, K=4
        h1 = h1 + w1[:, k:k + 1] * x[k:k + 1, :]
    h1 = jnp.maximum(h1 + b1_ref[...], 0.0)          # bias added once per tile

    # ---- layer 2 (20 -> 20) on the MXU, f32 accumulation ----
    h2 = jnp.dot(w2_ref[...], h1, preferred_element_type=jnp.float32) + b2_ref[...]
    h2 = jnp.maximum(h2, 0.0)                        # (20, Bt)

    # ---- layer 3 (20 -> 3) ----
    logits = jnp.dot(w3_ref[...], h2, preferred_element_type=jnp.float32) + b3_ref[...]

    # softmax over the feature (sublane) axis == F.softmax(dim=-1) of (B, 3).
    # Exact division so that per-column probabilities sum to 1 (approx reciprocal
    # previously broke the sum-to-one check).
    m = jnp.max(logits, axis=0, keepdims=True)       # (1, Bt) sublane reduce
    e = jnp.exp(logits - m)
    denom = jnp.sum(e, axis=0, keepdims=True)
    o_ref[...] = e / denom


@functools.partial(jax.jit, static_argnames=("b_tile",))
def net_test(x, params, *, b_tile=1024):
    """Pallas implementation of NET.test(x).

    x      : (B, n_feature) float32 (PyTorch layout)
    params : (w1, b1, w2, b2, w3, b3) with torch-style weights (out, in), biases (out,)
    returns: (B, n_output) float32 softmax probabilities
    """
    w1, b1, w2, b2, w3, b3 = params
    B, n_feature = x.shape
    n_output = w3.shape[0]

    # Batch on the lane axis, padded to a multiple of the tile width.
    b_pad = ((B + b_tile - 1) // b_tile) * b_tile
    xT = jnp.pad(x.T.astype(jnp.float32), ((0, 0), (0, b_pad - B)))

    col = lambda v: v.reshape(-1, 1).astype(jnp.float32)
    w1f, w2f, w3f = (w.astype(jnp.float32) for w in (w1, w2, w3))
    b1c, b2c, b3c = col(b1), col(b2), col(b3)

    resident = lambda a: pl.BlockSpec(a.shape, lambda i: (0, 0))  # stays in VMEM

    flops = 2 * b_pad * (w1f.size + w2f.size + w3f.size) + 8 * b_pad * n_output
    bytes_accessed = 4 * (xT.size + b_pad * n_output
                          + w1f.size + w2f.size + w3f.size
                          + b1c.size + b2c.size + b3c.size)

    outT = pl.pallas_call(
        _mlp_softmax_kernel,
        out_shape=jax.ShapeDtypeStruct((n_output, b_pad), jnp.float32),
        grid=(b_pad // b_tile,),
        in_specs=[
            pl.BlockSpec((n_feature, b_tile), lambda i: (0, i)),   # x tile (lane-dense)
            resident(w1f), resident(b1c),
            resident(w2f), resident(b2c),
            resident(w3f), resident(b3c),
        ],
        out_specs=pl.BlockSpec((n_output, b_tile), lambda i: (0, i)),
        compiler_params=pltpu.CompilerParams(
            dimension_semantics=("parallel",),          # megacore on v7x
            vmem_limit_bytes=32 * 1024 * 1024,          # safe on v5e/v6e/v7x
        ),
        cost_estimate=pl.CostEstimate(
            flops=int(flops),
            transcendentals=int(4 * b_pad),             # 3 exp + 1 div per column
            bytes_accessed=int(bytes_accessed),
        ),
    )(xT, w1f, b1c, w2f, b2c, w3f, b3c)

    return outT[:, :B].T                                # back to (B, n_output)


def init_params(key, n_feature=4, n_hidden1=20, n_hidden2=20, n_output=3):
    """Deterministic init mimicking torch.nn.Linear default (uniform +-1/sqrt(fan_in)).
    Weights stored torch-style (out, in), biases (out,)."""
    ks = jax.random.split(key, 6)

    def linear(kw, kb, fan_in, fan_out):
        bound = 1.0 / jnp.sqrt(jnp.float32(fan_in))
        w = jax.random.uniform(kw, (fan_out, fan_in), jnp.float32, -bound, bound)
        b = jax.random.uniform(kb, (fan_out,), jnp.float32, -bound, bound)
        return w, b

    w1, b1 = linear(ks[0], ks[1], n_feature, n_hidden1)
    w2, b2 = linear(ks[2], ks[3], n_hidden1, n_hidden2)
    w3, b3 = linear(ks[4], ks[5], n_hidden2, n_output)
    return (w1, b1, w2, b2, w3, b3)


def _ref(x, params):
    w1, b1, w2, b2, w3, b3 = params
    h1 = jnp.maximum(x @ w1.T + b1, 0.0)
    h2 = jnp.maximum(h1 @ w2.T + b2, 0.0)
    logits = h2 @ w3.T + b3
    return jax.nn.softmax(logits, axis=-1)


if __name__ == "__main__":
    key = jax.random.PRNGKey(0)
    k_x, k_p, k_x2 = jax.random.split(key, 3)

    # Small iris-like problem: batch=8, 4 features -> 3 classes.
    B, n_feature = 8, 4
    x = jax.random.normal(k_x, (B, n_feature), jnp.float32)
    params = init_params(k_p, n_feature=4, n_hidden1=20, n_hidden2=20, n_output=3)

    out = jax.block_until_ready(net_test(x, params))
    ref = _ref(x, params)
    assert out.shape == (B, 3)
    assert jnp.allclose(out, ref, atol=1e-4, rtol=1e-4)
    # Probabilities must sum to 1 (exact division in the softmax denominator).
    assert jnp.allclose(jnp.sum(out, axis=-1), jnp.ones((B,)), atol=1e-4)

    # Exercise multiple grid steps + batch padding path.
    B2 = 1000
    x2 = jax.random.normal(k_x2, (B2, n_feature), jnp.float32)
    out2 = jax.block_until_ready(net_test(x2, params, b_tile=512))
    ref2 = _ref(x2, params)
    assert out2.shape == (B2, 3)
    assert jnp.allclose(out2, ref2, atol=1e-4, rtol=1e-4)
    assert jnp.allclose(jnp.sum(out2, axis=-1), jnp.ones((B2,)), atol=1e-4)

    print("KERNEL_OK")
</pallas_src>

<mosaic_0001>
module attributes {stable_mosaic.version = 11 : i64} {
  func.func @_mlp_softmax_kernel(%arg0: i32, %arg1: memref<4x1024xf32, #tpu.memory_space<vmem>>, %arg2: memref<20x4xf32, #tpu.memory_space<vmem>>, %arg3: memref<20x1xf32, #tpu.memory_space<vmem>>, %arg4: memref<20x20xf32, #tpu.memory_space<vmem>>, %arg5: memref<20x1xf32, #tpu.memory_space<vmem>>, %arg6: memref<3x20xf32, #tpu.memory_space<vmem>>, %arg7: memref<3x1xf32, #tpu.memory_space<vmem>>, %arg8: memref<3x1024xf32, #tpu.memory_space<vmem>>) attributes {dimension_semantics = [#tpu.dimension_semantics<parallel>], iteration_bounds = array<i64: 1>, scalar_prefetch = 0 : i64, scratch_operands = 0 : i64, tpu.core_type = #tpu.core_type<tc>, window_params = [{transform_indices = @transform_0, window_bounds = array<i64: 4, 1024>}, {pipeline_mode = #tpu.pipeline_mode<synchronous>, transform_indices = @transform_1, window_bounds = array<i64: 20, 4>}, {pipeline_mode = #tpu.pipeline_mode<synchronous>, transform_indices = @transform_2, window_bounds = array<i64: 20, 1>}, {pipeline_mode = #tpu.pipeline_mode<synchronous>, transform_indices = @transform_3, window_bounds = array<i64: 20, 20>}, {pipeline_mode = #tpu.pipeline_mode<synchronous>, transform_indices = @transform_4, window_bounds = array<i64: 20, 1>}, {pipeline_mode = #tpu.pipeline_mode<synchronous>, transform_indices = @transform_5, window_bounds = array<i64: 3, 20>}, {pipeline_mode = #tpu.pipeline_mode<synchronous>, transform_indices = @transform_6, window_bounds = array<i64: 3, 1>}, {transform_indices = @transform_7, window_bounds = array<i64: 3, 1024>}]} {
    %c0 = arith.constant 0 : index
    %c0_0 = arith.constant 0 : index
    %0 = vector.load %arg1[%c0, %c0_0] : memref<4x1024xf32, #tpu.memory_space<vmem>>, vector<4x1024xf32>
    %c0_1 = arith.constant 0 : index
    %c0_2 = arith.constant 0 : index
    %1 = vector.load %arg2[%c0_1, %c0_2] : memref<20x4xf32, #tpu.memory_space<vmem>>, vector<20x4xf32>
    %2 = vector.extract_strided_slice %1 {offsets = [0, 0], sizes = [20, 1], strides = [1, 1]} : vector<20x4xf32> to vector<20x1xf32>
    %3 = vector.extract_strided_slice %0 {offsets = [0, 0], sizes = [1, 1024], strides = [1, 1]} : vector<4x1024xf32> to vector<1x1024xf32>
    %4 = vector.broadcast %2 : vector<20x1xf32> to vector<20x1024xf32>
    %5 = vector.broadcast %3 : vector<1x1024xf32> to vector<20x1024xf32>
    %6 = arith.mulf %4, %5 : vector<20x1024xf32>
    %7 = vector.extract_strided_slice %1 {offsets = [0, 1], sizes = [20, 1], strides = [1, 1]} : vector<20x4xf32> to vector<20x1xf32>
    %8 = vector.extract_strided_slice %0 {offsets = [1, 0], sizes = [1, 1024], strides = [1, 1]} : vector<4x1024xf32> to vector<1x1024xf32>
    %9 = vector.broadcast %7 : vector<20x1xf32> to vector<20x1024xf32>
    %10 = vector.broadcast %8 : vector<1x1024xf32> to vector<20x1024xf32>
    %11 = arith.mulf %9, %10 : vector<20x1024xf32>
    %12 = arith.addf %6, %11 : vector<20x1024xf32>
    %13 = vector.extract_strided_slice %1 {offsets = [0, 2], sizes = [20, 1], strides = [1, 1]} : vector<20x4xf32> to vector<20x1xf32>
    %14 = vector.extract_strided_slice %0 {offsets = [2, 0], sizes = [1, 1024], strides = [1, 1]} : vector<4x1024xf32> to vector<1x1024xf32>
    %15 = vector.broadcast %13 : vector<20x1xf32> to vector<20x1024xf32>
    %16 = vector.broadcast %14 : vector<1x1024xf32> to vector<20x1024xf32>
    %17 = arith.mulf %15, %16 : vector<20x1024xf32>
    %18 = arith.addf %12, %17 : vector<20x1024xf32>
    %19 = vector.extract_strided_slice %1 {offsets = [0, 3], sizes = [20, 1], strides = [1, 1]} : vector<20x4xf32> to vector<20x1xf32>
    %20 = vector.extract_strided_slice %0 {offsets = [3, 0], sizes = [1, 1024], strides = [1, 1]} : vector<4x1024xf32> to vector<1x1024xf32>
    %21 = vector.broadcast %19 : vector<20x1xf32> to vector<20x1024xf32>
    %22 = vector.broadcast %20 : vector<1x1024xf32> to vector<20x1024xf32>
    %23 = arith.mulf %21, %22 : vector<20x1024xf32>
    %24 = arith.addf %18, %23 : vector<20x1024xf32>
    %c0_3 = arith.constant 0 : index
    %c0_4 = arith.constant 0 : index
    %25 = vector.load %arg3[%c0_3, %c0_4] : memref<20x1xf32, #tpu.memory_space<vmem>>, vector<20x1xf32>
    %26 = vector.broadcast %25 : vector<20x1xf32> to vector<20x1024xf32>
    %27 = arith.addf %24, %26 : vector<20x1024xf32>
    %cst = arith.constant 0.000000e+00 : f32
    %28 = vector.broadcast %cst : f32 to vector<20x1024xf32>
    %29 = arith.maximumf %27, %28 : vector<20x1024xf32>
    %c0_5 = arith.constant 0 : index
    %c0_6 = arith.constant 0 : index
    %30 = vector.load %arg4[%c0_5, %c0_6] : memref<20x20xf32, #tpu.memory_space<vmem>>, vector<20x20xf32>
    %cst_7 = arith.constant dense<0.000000e+00> : vector<20x1024xf32>
    %31 = tpu.matmul %30, %29, %cst_7 {dimension_numbers = #tpu.dot_dimension_numbers<[1], [0], [0], [1], [0, 0, 1, 1], [], []>} : vector<20x20xf32>, vector<20x1024xf32>, vector<20x1024xf32> -> vector<20x1024xf32>
    %c0_8 = arith.constant 0 : index
    %c0_9 = arith.constant 0 : index
    %32 = vector.load %arg5[%c0_8, %c0_9] : memref<20x1xf32, #tpu.memory_space<vmem>>, vector<20x1xf32>
    %33 = vector.broadcast %32 : vector<20x1xf32> to vector<20x1024xf32>
    %34 = arith.addf %31, %33 : vector<20x1024xf32>
    %cst_10 = arith.constant 0.000000e+00 : f32
    %35 = vector.broadcast %cst_10 : f32 to vector<20x1024xf32>
    %36 = arith.maximumf %34, %35 : vector<20x1024xf32>
    %c0_11 = arith.constant 0 : index
    %c0_12 = arith.constant 0 : index
    %37 = vector.load %arg6[%c0_11, %c0_12] : memref<3x20xf32, #tpu.memory_space<vmem>>, vector<3x20xf32>
    %cst_13 = arith.constant dense<0.000000e+00> : vector<3x1024xf32>
    %38 = tpu.matmul %37, %36, %cst_13 {dimension_numbers = #tpu.dot_dimension_numbers<[1], [0], [0], [1], [0, 0, 1, 1], [], []>} : vector<3x20xf32>, vector<20x1024xf32>, vector<3x1024xf32> -> vector<3x1024xf32>
    %c0_14 = arith.constant 0 : index
    %c0_15 = arith.constant 0 : index
    %39 = vector.load %arg7[%c0_14, %c0_15] : memref<3x1xf32, #tpu.memory_space<vmem>>, vector<3x1xf32>
    %40 = vector.broadcast %39 : vector<3x1xf32> to vector<3x1024xf32>
    %41 = arith.addf %38, %40 : vector<3x1024xf32>
    %cst_16 = arith.constant dense<0xFF800000> : vector<1024xf32>
    %42 = vector.multi_reduction <maximumf>, %41, %cst_16 [0] : vector<3x1024xf32> to vector<1024xf32>
    %43 = vector.shape_cast %42 : vector<1024xf32> to vector<1x1024xf32>
    %44 = vector.broadcast %43 : vector<1x1024xf32> to vector<3x1024xf32>
    %45 = arith.subf %41, %44 : vector<3x1024xf32>
    %46 = math.exp %45 : vector<3x1024xf32>
    %cst_17 = arith.constant dense<0.000000e+00> : vector<1024xf32>
    %47 = vector.multi_reduction <add>, %46, %cst_17 [0] : vector<3x1024xf32> to vector<1024xf32>
    %48 = vector.shape_cast %47 : vector<1024xf32> to vector<1x1024xf32>
    %49 = vector.broadcast %48 : vector<1x1024xf32> to vector<3x1024xf32>
    %50 = arith.divf %46, %49 : vector<3x1024xf32>
    %c0_18 = arith.constant 0 : index
    %c0_19 = arith.constant 0 : index
    %51 = vector.load %arg8[%c0_18, %c0_19] : memref<3x1024xf32, #tpu.memory_space<vmem>>, vector<3x1024xf32>
    tpu.vector_store %arg8[%c0_18, %c0_19], %50 {strides = array<i32>} : memref<3x1024xf32, #tpu.memory_space<vmem>>, vector<3x1024xf32>,
    return
  }
  func.func @transform_0(%arg0: i32) -> (i32, i32) {
    %c0_i32 = arith.constant 0 : i32
    %c0_i32_0 = arith.constant 0 : i32
    return %c0_i32, %arg0 : i32, i32
  }
  func.func @transform_1(%arg0: i32) -> (i32, i32) {
    %c0_i32 = arith.constant 0 : i32
    %c0_i32_0 = arith.constant 0 : i32
    %c0_i32_1 = arith.constant 0 : i32
    return %c0_i32, %c0_i32_0 : i32, i32
  }
  func.func @transform_2(%arg0: i32) -> (i32, i32) {
    %c0_i32 = arith.constant 0 : i32
    %c0_i32_0 = arith.constant 0 : i32
    %c0_i32_1 = arith.constant 0 : i32
    return %c0_i32, %c0_i32_0 : i32, i32
  }
  func.func @transform_3(%arg0: i32) -> (i32, i32) {
    %c0_i32 = arith.constant 0 : i32
    %c0_i32_0 = arith.constant 0 : i32
    %c0_i32_1 = arith.constant 0 : i32
    return %c0_i32, %c0_i32_0 : i32, i32
  }
  func.func @transform_4(%arg0: i32) -> (i32, i32) {
    %c0_i32 = arith.constant 0 : i32
    %c0_i32_0 = arith.constant 0 : i32
    %c0_i32_1 = arith.constant 0 : i32
    return %c0_i32, %c0_i32_0 : i32, i32
  }
  func.func @transform_5(%arg0: i32) -> (i32, i32) {
    %c0_i32 = arith.constant 0 : i32
    %c0_i32_0 = arith.constant 0 : i32
    %c0_i32_1 = arith.constant 0 : i32
    return %c0_i32, %c0_i32_0 : i32, i32
  }
  func.func @transform_6(%arg0: i32) -> (i32, i32) {
    %c0_i32 = arith.constant 0 : i32
    %c0_i32_0 = arith.constant 0 : i32
    %c0_i32_1 = arith.constant 0 : i32
    return %c0_i32, %c0_i32_0 : i32, i32
  }
  func.func @transform_7(%arg0: i32) -> (i32, i32) {
    %c0_i32 = arith.constant 0 : i32
    %c0_i32_0 = arith.constant 0 : i32
    return %c0_i32, %arg0 : i32, i32
  }
}

</mosaic_0001>

<llo_original>
// kernel: net_test.1
$region0: #{net_test.1}
  #allocation0 [shape = 'u32[]', space=smem, size = 0x4, offset = 0x4, fixed_abs, tag = 'smem constant byte address 0x4 - core index']
  #allocation1 [shape = 'u32[144,128]{1,0:T(1,128)}', space=vmem, size = 0x12000, scoped, tag = 'internal scratch']
  %s0 = inlined_call_operand.vmem [shape: f32[4,1024], index: 0, kind: input, shape index: {}]
  %s1 = inlined_call_operand.vmem [shape: f32[20,4], index: 1, kind: input, shape index: {}]
  %s2 = inlined_call_operand.vmem [shape: f32[20,1], index: 2, kind: input, shape index: {}]
  %s3 = inlined_call_operand.vmem [shape: f32[20,20], index: 3, kind: input, shape index: {}]
  %s4 = inlined_call_operand.vmem [shape: f32[20,1], index: 4, kind: input, shape index: {}]
  %s5 = inlined_call_operand.vmem [shape: f32[3,20], index: 5, kind: input, shape index: {}]
  %s6 = inlined_call_operand.vmem [shape: f32[3,1], index: 6, kind: input, shape index: {}]
  %s7 = inlined_call_operand.vmem [shape: f32[3,1024], index: 7, kind: output, shape index: {}]
  %s8 = sld [smem:[#allocation0]]
  $region38: #{net_test.1} parent=0
    _
  %s10 = ssub.s32 1, %s8
  %s11 = scalar_select 0, %s10, %s8
  // Predicated region
  $region2: #{net_test.1} parent=0 // pred_check
    _
  $region3: #{net_test.1} parent=0 // pred_check_branch
    %13 = sbr.rel (0) target = $region5
  $region4: #{net_test.1} parent=0 // pred_region
    _
  $region5: #{net_test.1} parent=0 // pred_fallthru
    _
  // Predicated region
  $region6: #{net_test.1} parent=0 // pred_check
    _
  $region7: #{net_test.1} parent=0 // pred_check_branch
    %15 = sbr.rel (0) target = $region9
  $region8: #{net_test.1} parent=0 // pred_region
    _
  $region9: #{net_test.1} parent=0 // pred_fallthru
    _
  // Predicated region
  $region10: #{net_test.1} parent=0 // pred_check
    _
  $region11: #{net_test.1} parent=0 // pred_check_branch
    %17 = sbr.rel (0) target = $region13
  $region12: #{net_test.1} parent=0 // pred_region
    _
  $region13: #{net_test.1} parent=0 // pred_fallthru
    _
  // Predicated region
  $region14: #{net_test.1} parent=0 // pred_check
    _
  $region15: #{net_test.1} parent=0 // pred_check_branch
    %19 = sbr.rel (0) target = $region17
  $region16: #{net_test.1} parent=0 // pred_region
    _
  $region17: #{net_test.1} parent=0 // pred_fallthru
    _
  // Predicated region
  $region18: #{net_test.1} parent=0 // pred_check
    _
  $region19: #{net_test.1} parent=0 // pred_check_branch
    %21 = sbr.rel (0) target = $region21
  $region20: #{net_test.1} parent=0 // pred_region
    _
  $region21: #{net_test.1} parent=0 // pred_fallthru
    _
  // Predicated region
  $region22: #{net_test.1} parent=0 // pred_check
    _
  $region23: #{net_test.1} parent=0 // pred_check_branch
    %23 = sbr.rel (0) target = $region25
  $region24: #{net_test.1} parent=0 // pred_region
    _
  $region25: #{net_test.1} parent=0 // pred_fallthru
    _
  // Predicated region
  $region26: #{net_test.1} parent=0 // pred_check
    _
  $region27: #{net_test.1} parent=0 // pred_check_branch
    %25 = sbr.rel (0) target = $region29
  $region28: #{net_test.1} parent=0 // pred_region
    _
  $region29: #{net_test.1} parent=0 // pred_fallthru
    _
  %v26 = vld [vmem:[%s0] sm:$0xff]
  %v27 = vld [vmem:[%s0 + $0x8] sm:$0xff]
  %v28 = vld [vmem:[%s0 + $0x10] sm:$0xff]
  %v29 = vld [vmem:[%s0 + $0x18] sm:$0xff]
  %v30 = vld [vmem:[%s1] sm:$0xff]
  %v31 = vld [vmem:[%s1 + $0x8] sm:$0xff]
  %v32 = vld [vmem:[%s1 + $0x10] sm:$0xf]
  %34 = vset.pattern.permute.xlu0 0
  %35 = vperm.xlu0 %34, %v30
  %v36 = vpop.permute.xlu0 %35
  %39 = vset.pattern.permute.xlu0 0
  %40 = vperm.xlu0 %39, %v31
  %v41 = vpop.permute.xlu0 %40
  %44 = vset.pattern.permute.xlu0 0
  %45 = vperm.xlu0 %44, %v32
  %v46 = vpop.permute.xlu0 %45
  %v52 = vlaneseq
  %v53 = vshrl.u32 %v52, 7
  %v54 = vsub.s32 0, %v53
  %v55 = vrot.slane %v26, %v54
  %v56 = vlaneseq
  %v57 = vshrl.u32 %v56, 7
  %v58 = vsub.s32 4, %v57
  %v59 = vrot.slane %v26, %v58
  %v60 = vlaneseq
  %v61 = vshrl.u32 %v60, 7
  %v62 = vsub.s32 0, %v61
  %v63 = vrot.slane %v27, %v62
  %v64 = vlaneseq
  %v65 = vshrl.u32 %v64, 7
  %v66 = vsub.s32 4, %v65
  %v67 = vrot.slane %v27, %v66
  %v68 = vlaneseq
  %v69 = vshrl.u32 %v68, 7
  %v70 = vsub.s32 0, %v69
  %v71 = vrot.slane %v28, %v70
  %v72 = vlaneseq
  %v73 = vshrl.u32 %v72, 7
  %v74 = vsub.s32 4, %v73
  %v75 = vrot.slane %v28, %v74
  %v76 = vlaneseq
  %v77 = vshrl.u32 %v76, 7
  %v78 = vsub.s32 0, %v77
  %v79 = vrot.slane %v29, %v78
  %v80 = vlaneseq
  %v81 = vshrl.u32 %v80, 7
  %v82 = vsub.s32 4, %v81
  %v83 = vrot.slane %v29, %v82
  %v92 = vlaneseq
  %v93 = vshrl.u32 %v92, 7
  %v94 = vsub.s32 0, %v93
  %v95 = vrot.slane %v55, %v94
  %v96 = vlaneseq
  %v97 = vshrl.u32 %v96, 7
  %v98 = vsub.s32 0, %v97
  %v99 = vrot.slane %v59, %v98
  %v100 = vlaneseq
  %v101 = vshrl.u32 %v100, 7
  %v102 = vsub.s32 0, %v101
  %v103 = vrot.slane %v63, %v102
  %v104 = vlaneseq
  %v105 = vshrl.u32 %v104, 7
  %v106 = vsub.s32 0, %v105
  %v107 = vrot.slane %v67, %v106
  %v108 = vlaneseq
  %v109 = vshrl.u32 %v108, 7
  %v110 = vsub.s32 0, %v109
  %v111 = vrot.slane %v71, %v110
  %v112 = vlaneseq
  %v113 = vshrl.u32 %v112, 7
  %v114 = vsub.s32 0, %v113
  %v115 = vrot.slane %v75, %v114
  %v116 = vlaneseq
  %v117 = vshrl.u32 %v116, 7
  %v118 = vsub.s32 0, %v117
  %v119 = vrot.slane %v79, %v118
  %v120 = vlaneseq
  %v121 = vshrl.u32 %v120, 7
  %v122 = vsub.s32 0, %v121
  %v123 = vrot.slane %v83, %v122
  %v124 = vmul.f32 %v36, %v95
  %v125 = vmul.f32 %v36, %v99
  %v126 = vmul.f32 %v36, %v103
  %v127 = vmul.f32 %v36, %v107
  %v128 = vmul.f32 %v36, %v111
  %v129 = vmul.f32 %v36, %v115
  %v130 = vmul.f32 %v36, %v119
  %v131 = vmul.f32 %v36, %v123
  %v132 = vmul.f32 %v41, %v95
  %v133 = vmul.f32 %v41, %v99
  %v134 = vmul.f32 %v41, %v103
  %v135 = vmul.f32 %v41, %v107
  %v136 = vmul.f32 %v41, %v111
  %v137 = vmul.f32 %v41, %v115
  %v138 = vmul.f32 %v41, %v119
  %v139 = vmul.f32 %v41, %v123
  %v140 = vmul.f32 %v46, %v95
  %v141 = vmul.f32 %v46, %v99
  %v142 = vmul.f32 %v46, %v103
  %v143 = vmul.f32 %v46, %v107
  %v144 = vmul.f32 %v46, %v111
  %v145 = vmul.f32 %v46, %v115
  %v146 = vmul.f32 %v46, %v119
  %v147 = vmul.f32 %v46, %v123
  %148 = vset.pattern.permute.xlu0 1
  %149 = vperm.xlu0 %148, %v30
  %v150 = vpop.permute.xlu0 %149
  %152 = vset.pattern.permute.xlu0 1
  %153 = vperm.xlu0 %152, %v31
  %v154 = vpop.permute.xlu0 %153
  %156 = vset.pattern.permute.xlu0 1
  %157 = vperm.xlu0 %156, %v32
  %v158 = vpop.permute.xlu0 %157
  %v160 = vlaneseq
  %v161 = vshrl.u32 %v160, 7
  %v162 = vsub.s32 1, %v161
  %v163 = vrot.slane %v26, %v162
  %v164 = vlaneseq
  %v165 = vshrl.u32 %v164, 7
  %v166 = vsub.s32 5, %v165
  %v167 = vrot.slane %v26, %v166
  %v168 = vlaneseq
  %v169 = vshrl.u32 %v168, 7
  %v170 = vsub.s32 1, %v169
  %v171 = vrot.slane %v27, %v170
  %v172 = vlaneseq
  %v173 = vshrl.u32 %v172, 7
  %v174 = vsub.s32 5, %v173
  %v175 = vrot.slane %v27, %v174
  %v176 = vlaneseq
  %v177 = vshrl.u32 %v176, 7
  %v178 = vsub.s32 1, %v177
  %v179 = vrot.slane %v28, %v178
  %v180 = vlaneseq
  %v181 = vshrl.u32 %v180, 7
  %v182 = vsub.s32 5, %v181
  %v183 = vrot.slane %v28, %v182
  %v184 = vlaneseq
  %v185 = vshrl.u32 %v184, 7
  %v186 = vsub.s32 1, %v185
  %v187 = vrot.slane %v29, %v186
  %v188 = vlaneseq
  %v189 = vshrl.u32 %v188, 7
  %v190 = vsub.s32 5, %v189
  %v191 = vrot.slane %v29, %v190
  %v200 = vlaneseq
  %v201 = vshrl.u32 %v200, 7
  %v202 = vsub.s32 1, %v201
  %v203 = vrot.slane %v163, %v202
  %v204 = vlaneseq
  %v205 = vshrl.u32 %v204, 7
  %v206 = vsub.s32 1, %v205
  %v207 = vrot.slane %v167, %v206
  %v208 = vlaneseq
  %v209 = vshrl.u32 %v208, 7
  %v210 = vsub.s32 1, %v209
  %v211 = vrot.slane %v171, %v210
  %v212 = vlaneseq
  %v213 = vshrl.u32 %v212, 7
  %v214 = vsub.s32 1, %v213
  %v215 = vrot.slane %v175, %v214
  %v216 = vlaneseq
  %v217 = vshrl.u32 %v216, 7
  %v218 = vsub.s32 1, %v217
  %v219 = vrot.slane %v179, %v218
  %v220 = vlaneseq
  %v221 = vshrl.u32 %v220, 7
  %v222 = vsub.s32 1, %v221
  %v223 = vrot.slane %v183, %v222
  %v224 = vlaneseq
  %v225 = vshrl.u32 %v224, 7
  %v226 = vsub.s32 1, %v225
  %v227 = vrot.slane %v187, %v226
  %v228 = vlaneseq
  %v229 = vshrl.u32 %v228, 7
  %v230 = vsub.s32 1, %v229
  %v231 = vrot.slane %v191, %v230
  %v232 = vmul.f32 %v150, %v203
  %v233 = vmul.f32 %v150, %v207
  %v234 = vmul.f32 %v150, %v211
  %v235 = vmul.f32 %v150, %v215
  %v236 = vmul.f32 %v150, %v219
  %v237 = vmul.f32 %v150, %v223
  %v238 = vmul.f32 %v150, %v227
  %v239 = vmul.f32 %v150, %v231
  %v240 = vmul.f32 %v154, %v203
  %v241 = vmul.f32 %v154, %v207
  %v242 = vmul.f32 %v154, %v211
  %v243 = vmul.f32 %v154, %v215
  %v244 = vmul.f32 %v154, %v219
  %v245 = vmul.f32 %v154, %v223
  %v246 = vmul.f32 %v154, %v227
  %v247 = vmul.f32 %v154, %v231
  %v248 = vmul.f32 %v158, %v203
  %v249 = vmul.f32 %v158, %v207
  %v250 = vmul.f32 %v158, %v211
  %v251 = vmul.f32 %v158, %v215
  %v252 = vmul.f32 %v158, %v219
  %v253 = vmul.f32 %v158, %v223
  %v254 = vmul.f32 %v158, %v227
  %v255 = vmul.f32 %v158, %v231
  %v256 = vadd.f32 %v124, %v232
  %v257 = vadd.f32 %v125, %v233
  %v258 = vadd.f32 %v126, %v234
  %v259 = vadd.f32 %v127, %v235
  %v260 = vadd.f32 %v128, %v236
  %v261 = vadd.f32 %v129, %v237
  %v262 = vadd.f32 %v130, %v238
  %v263 = vadd.f32 %v131, %v239
  %v264 = vadd.f32 %v132, %v240
  %v265 = vadd.f32 %v133, %v241
  %v266 = vadd.f32 %v134, %v242
  %v267 = vadd.f32 %v135, %v243
  %v268 = vadd.f32 %v136, %v244
  %v269 = vadd.f32 %v137, %v245
  %v270 = vadd.f32 %v138, %v246
  %v271 = vadd.f32 %v139, %v247
  %v272 = vadd.f32 %v140, %v248
  %v273 = vadd.f32 %v141, %v249
  %v274 = vadd.f32 %v142, %v250
  %v275 = vadd.f32 %v143, %v251
  %v276 = vadd.f32 %v144, %v252
  %v277 = vadd.f32 %v145, %v253
  %v278 = vadd.f32 %v146, %v254
  %v279 = vadd.f32 %v147, %v255
  %280 = vset.pattern.permute.xlu0 2
  %281 = vperm.xlu0 %280, %v30
  %v282 = vpop.permute.xlu0 %281
  %284 = vset.pattern.permute.xlu0 2
  %285 = vperm.xlu0 %284, %v31
  %v286 = vpop.permute.xlu0 %285
  %288 = vset.pattern.permute.xlu0 2
  %289 = vperm.xlu0 %288, %v32
  %v290 = vpop.permute.xlu0 %289
  %v292 = vlaneseq
  %v293 = vshrl.u32 %v292, 7
  %v294 = vsub.s32 2, %v293
  %v295 = vrot.slane %v26, %v294
  %v296 = vlaneseq
  %v297 = vshrl.u32 %v296, 7
  %v298 = vsub.s32 6, %v297
  %v299 = vrot.slane %v26, %v298
  %v300 = vlaneseq
  %v301 = vshrl.u32 %v300, 7
  %v302 = vsub.s32 2, %v301
  %v303 = vrot.slane %v27, %v302
  %v304 = vlaneseq
  %v305 = vshrl.u32 %v304, 7
  %v306 = vsub.s32 6, %v305
  %v307 = vrot.slane %v27, %v306
  %v308 = vlaneseq
  %v309 = vshrl.u32 %v308, 7
  %v310 = vsub.s32 2, %v309
  %v311 = vrot.slane %v28, %v310
  %v312 = vlaneseq
  %v313 = vshrl.u32 %v312, 7
  %v314 = vsub.s32 6, %v313
  %v315 = vrot.slane %v28, %v314
  %v316 = vlaneseq
  %v317 = vshrl.u32 %v316, 7
  %v318 = vsub.s32 2, %v317
  %v319 = vrot.slane %v29, %v318
  %v320 = vlaneseq
  %v321 = vshrl.u32 %v320, 7
  %v322 = vsub.s32 6, %v321
  %v323 = vrot.slane %v29, %v322
  %v332 = vlaneseq
  %v333 = vshrl.u32 %v332, 7
  %v334 = vsub.s32 2, %v333
  %v335 = vrot.slane %v295, %v334
  %v336 = vlaneseq
  %v337 = vshrl.u32 %v336, 7
  %v338 = vsub.s32 2, %v337
  %v339 = vrot.slane %v299, %v338
  %v340 = vlaneseq
  %v341 = vshrl.u32 %v340, 7
  %v342 = vsub.s32 2, %v341
  %v343 = vrot.slane %v303, %v342
  %v344 = vlaneseq
  %v345 = vshrl.u32 %v344, 7
  %v346 = vsub.s32 2, %v345
  %v347 = vrot.slane %v307, %v346
  %v348 = vlaneseq
  %v349 = vshrl.u32 %v348, 7
  %v350 = vsub.s32 2, %v349
  %v351 = vrot.slane %v311, %v350
  %v352 = vlaneseq
  %v353 = vshrl.u32 %v352, 7
  %v354 = vsub.s32 2, %v353
  %v355 = vrot.slane %v315, %v354
  %v356 = vlaneseq
  %v357 = vshrl.u32 %v356, 7
  %v358 = vsub.s32 2, %v357
  %v359 = vrot.slane %v319, %v358
  %v360 = vlaneseq
  %v361 = vshrl.u32 %v360, 7
  %v362 = vsub.s32 2, %v361
  %v363 = vrot.slane %v323, %v362
  %v364 = vmul.f32 %v282, %v335
  %v365 = vmul.f32 %v282, %v339
  %v366 = vmul.f32 %v282, %v343
  %v367 = vmul.f32 %v282, %v347
  %v368 = vmul.f32 %v282, %v351
  %v369 = vmul.f32 %v282, %v355
  %v370 = vmul.f32 %v282, %v359
  %v371 = vmul.f32 %v282, %v363
  %v372 = vmul.f32 %v286, %v335
  %v373 = vmul.f32 %v286, %v339
  %v374 = vmul.f32 %v286, %v343
  %v375 = vmul.f32 %v286, %v347
  %v376 = vmul.f32 %v286, %v351
  %v377 = vmul.f32 %v286, %v355
  %v378 = vmul.f32 %v286, %v359
  %v379 = vmul.f32 %v286, %v363
  %v380 = vmul.f32 %v290, %v335
  %v381 = vmul.f32 %v290, %v339
  %v382 = vmul.f32 %v290, %v343
  %v383 = vmul.f32 %v290, %v347
  %v384 = vmul.f32 %v290, %v351
  %v385 = vmul.f32 %v290, %v355
  %v386 = vmul.f32 %v290, %v359
  %v387 = vmul.f32 %v290, %v363
  %v388 = vadd.f32 %v256, %v364
  %v389 = vadd.f32 %v257, %v365
  %v390 = vadd.f32 %v258, %v366
  %v391 = vadd.f32 %v259, %v367
  %v392 = vadd.f32 %v260, %v368
  %v393 = vadd.f32 %v261, %v369
  %v394 = vadd.f32 %v262, %v370
  %v395 = vadd.f32 %v263, %v371
  %v396 = vadd.f32 %v264, %v372
  %v397 = vadd.f32 %v265, %v373
  %v398 = vadd.f32 %v266, %v374
  %v399 = vadd.f32 %v267, %v375
  %v400 = vadd.f32 %v268, %v376
  %v401 = vadd.f32 %v269, %v377
  %v402 = vadd.f32 %v270, %v378
  %v403 = vadd.f32 %v271, %v379
  %v404 = vadd.f32 %v272, %v380
  %v405 = vadd.f32 %v273, %v381
  %v406 = vadd.f32 %v274, %v382
  %v407 = vadd.f32 %v275, %v383
  %v408 = vadd.f32 %v276, %v384
  %v409 = vadd.f32 %v277, %v385
  %v410 = vadd.f32 %v278, %v386
  %v411 = vadd.f32 %v279, %v387
  %412 = vset.pattern.permute.xlu0 3
  %413 = vperm.xlu0 %412, %v30
  %v414 = vpop.permute.xlu0 %413
  %416 = vset.pattern.permute.xlu0 3
  %417 = vperm.xlu0 %416, %v31
  %v418 = vpop.permute.xlu0 %417
  %420 = vset.pattern.permute.xlu0 3
  %421 = vperm.xlu0 %420, %v32
  %v422 = vpop.permute.xlu0 %421
  %v424 = vlaneseq
  %v425 = vshrl.u32 %v424, 7
  %v426 = vsub.s32 3, %v425
  %v427 = vrot.slane %v26, %v426
  %v428 = vlaneseq
  %v429 = vshrl.u32 %v428, 7
  %v430 = vsub.s32 7, %v429
  %v431 = vrot.slane %v26, %v430
  %v432 = vlaneseq
  %v433 = vshrl.u32 %v432, 7
  %v434 = vsub.s32 3, %v433
  %v435 = vrot.slane %v27, %v434
  %v436 = vlaneseq
  %v437 = vshrl.u32 %v436, 7
  %v438 = vsub.s32 7, %v437
  %v439 = vrot.slane %v27, %v438
  %v440 = vlaneseq
  %v441 = vshrl.u32 %v440, 7
  %v442 = vsub.s32 3, %v441
  %v443 = vrot.slane %v28, %v442
  %v444 = vlaneseq
  %v445 = vshrl.u32 %v444, 7
  %v446 = vsub.s32 7, %v445
  %v447 = vrot.slane %v28, %v446
  %v448 = vlaneseq
  %v449 = vshrl.u32 %v448, 7
  %v450 = vsub.s32 3, %v449
  %v451 = vrot.slane %v29, %v450
  %v452 = vlaneseq
  %v453 = vshrl.u32 %v452, 7
  %v454 = vsub.s32 7, %v453
  %v455 = vrot.slane %v29, %v454
  %v464 = vlaneseq
  %v465 = vshrl.u32 %v464, 7
  %v466 = vsub.s32 3, %v465
  %v467 = vrot.slane %v427, %v466
  %v468 = vlaneseq
  %v469 = vshrl.u32 %v468, 7
  %v470 = vsub.s32 3, %v469
  %v471 = vrot.slane %v431, %v470
  %v472 = vlaneseq
  %v473 = vshrl.u32 %v472, 7
  %v474 = vsub.s32 3, %v473
  %v475 = vrot.slane %v435, %v474
  %v476 = vlaneseq
  %v477 = vshrl.u32 %v476, 7
  %v478 = vsub.s32 3, %v477
  %v479 = vrot.slane %v439, %v478
  %v480 = vlaneseq
  %v481 = vshrl.u32 %v480, 7
  %v482 = vsub.s32 3, %v481
  %v483 = vrot.slane %v443, %v482
  %v484 = vlaneseq
  %v485 = vshrl.u32 %v484, 7
  %v486 = vsub.s32 3, %v485
  %v487 = vrot.slane %v447, %v486
  %v488 = vlaneseq
  %v489 = vshrl.u32 %v488, 7
  %v490 = vsub.s32 3, %v489
  %v491 = vrot.slane %v451, %v490
  %v492 = vlaneseq
  %v493 = vshrl.u32 %v492, 7
  %v494 = vsub.s32 3, %v493
  %v495 = vrot.slane %v455, %v494
  %v496 = vmul.f32 %v414, %v467
  %v497 = vmul.f32 %v414, %v471
  %v498 = vmul.f32 %v414, %v475
  %v499 = vmul.f32 %v414, %v479
  %v500 = vmul.f32 %v414, %v483
  %v501 = vmul.f32 %v414, %v487
  %v502 = vmul.f32 %v414, %v491
  %v503 = vmul.f32 %v414, %v495
  %v504 = vmul.f32 %v418, %v467
  %v505 = vmul.f32 %v418, %v471
  %v506 = vmul.f32 %v418, %v475
  %v507 = vmul.f32 %v418, %v479
  %v508 = vmul.f32 %v418, %v483
  %v509 = vmul.f32 %v418, %v487
  %v510 = vmul.f32 %v418, %v491
  %v511 = vmul.f32 %v418, %v495
  %v512 = vmul.f32 %v422, %v467
  %v513 = vmul.f32 %v422, %v471
  %v514 = vmul.f32 %v422, %v475
  %v515 = vmul.f32 %v422, %v479
  %v516 = vmul.f32 %v422, %v483
  %v517 = vmul.f32 %v422, %v487
  %v518 = vmul.f32 %v422, %v491
  %v519 = vmul.f32 %v422, %v495
  %v520 = vadd.f32 %v388, %v496
  %v521 = vadd.f32 %v389, %v497
  %v522 = vadd.f32 %v390, %v498
  %v523 = vadd.f32 %v391, %v499
  %v524 = vadd.f32 %v392, %v500
  %v525 = vadd.f32 %v393, %v501
  %v526 = vadd.f32 %v394, %v502
  %v527 = vadd.f32 %v395, %v503
  %v528 = vadd.f32 %v396, %v504
  %v529 = vadd.f32 %v397, %v505
  %v530 = vadd.f32 %v398, %v506
  %v531 = vadd.f32 %v399, %v507
  %v532 = vadd.f32 %v400, %v508
  %v533 = vadd.f32 %v401, %v509
  %v534 = vadd.f32 %v402, %v510
  %v535 = vadd.f32 %v403, %v511
  %v536 = vadd.f32 %v404, %v512
  %v537 = vadd.f32 %v405, %v513
  %v538 = vadd.f32 %v406, %v514
  %v539 = vadd.f32 %v407, %v515
  %v540 = vadd.f32 %v408, %v516
  %v541 = vadd.f32 %v409, %v517
  %v542 = vadd.f32 %v410, %v518
  %v543 = vadd.f32 %v411, %v519
  %v544 = vld [vmem:[%s2] sm:$0xff]
  %v545 = vld [vmem:[%s2 + $0x8] sm:$0xff]
  %v546 = vld [vmem:[%s2 + $0x10] sm:$0xf]
  %548 = vset.pattern.permute.xlu0 0
  %549 = vperm.xlu0 %548, %v544
  %v550 = vpop.permute.xlu0 %549
  %553 = vset.pattern.permute.xlu0 0
  %554 = vperm.xlu0 %553, %v545
  %v555 = vpop.permute.xlu0 %554
  %558 = vset.pattern.permute.xlu0 0
  %559 = vperm.xlu0 %558, %v546
  %v560 = vpop.permute.xlu0 %559
  %v562 = vadd.f32 %v520, %v550
  %v563 = vadd.f32 %v521, %v550
  %v564 = vadd.f32 %v522, %v550
  %v565 = vadd.f32 %v523, %v550
  %v566 = vadd.f32 %v524, %v550
  %v567 = vadd.f32 %v525, %v550
  %v568 = vadd.f32 %v526, %v550
  %v569 = vadd.f32 %v527, %v550
  %v570 = vadd.f32 %v528, %v555
  %v571 = vadd.f32 %v529, %v555
  %v572 = vadd.f32 %v530, %v555
  %v573 = vadd.f32 %v531, %v555
  %v574 = vadd.f32 %v532, %v555
  %v575 = vadd.f32 %v533, %v555
  %v576 = vadd.f32 %v534, %v555
  %v577 = vadd.f32 %v535, %v555
  %v578 = vadd.f32 %v536, %v560
  %v579 = vadd.f32 %v537, %v560
  %v580 = vadd.f32 %v538, %v560
  %v581 = vadd.f32 %v539, %v560
  %v582 = vadd.f32 %v540, %v560
  %v583 = vadd.f32 %v541, %v560
  %v584 = vadd.f32 %v542, %v560
  %v585 = vadd.f32 %v543, %v560
  %v586 = vmax.f32 %v562, 0.0
  %v587 = vmax.f32 %v563, 0.0
  %v588 = vmax.f32 %v564, 0.0
  %v589 = vmax.f32 %v565, 0.0
  %v590 = vmax.f32 %v566, 0.0
  %v591 = vmax.f32 %v567, 0.0
  %v592 = vmax.f32 %v568, 0.0
  %v593 = vmax.f32 %v569, 0.0
  %v594 = vmax.f32 %v570, 0.0
  %v595 = vmax.f32 %v571, 0.0
  %v596 = vmax.f32 %v572, 0.0
  %v597 = vmax.f32 %v573, 0.0
  %v598 = vmax.f32 %v574, 0.0
  %v599 = vmax.f32 %v575, 0.0
  %v600 = vmax.f32 %v576, 0.0
  %v601 = vmax.f32 %v577, 0.0
  %v602 = vmax.f32 %v578, 0.0
  %v603 = vmax.f32 %v579, 0.0
  %v604 = vmax.f32 %v580, 0.0
  %v605 = vmax.f32 %v581, 0.0
  %v606 = vmax.f32 %v582, 0.0
  %v607 = vmax.f32 %v583, 0.0
  %v608 = vmax.f32 %v584, 0.0
  %v609 = vmax.f32 %v585, 0.0
  %v610 = vld [vmem:[%s3] sm:$0xff]
  %v611 = vld [vmem:[%s3 + $0x8] sm:$0xff]
  %v612 = vld [vmem:[%s3 + $0x10] sm:$0xf]
  %v613 = vld [vmem:[%s4] sm:$0xff]
  %v614 = vld [vmem:[%s4 + $0x8] sm:$0xff]
  %v615 = vld [vmem:[%s4 + $0x10] sm:$0xf]
  %617 = vset.pattern.permute.xlu0 0
  %618 = vperm.xlu0 %617, %v613
  %v619 = vpop.permute.xlu0 %618
  %622 = vset.pattern.permute.xlu0 0
  %623 = vperm.xlu0 %622, %v614
  %v624 = vpop.permute.xlu0 %623
  %627 = vset.pattern.permute.xlu0 0
  %628 = vperm.xlu0 %627, %v615
  %v629 = vpop.permute.xlu0 %628
  %vm631 = vcmask 162816
  %v633 = vsel %vm631, %v610, 0
  %v636 = vsel %vm631, %v611, 0
  %v639 = vsel %vm631, %v612, 0
  %vm641 = vcmask 1043456
  %v643 = vsel %vm641, %v602, 0
  %v646 = vsel %vm641, %v603, 0
  %v649 = vsel %vm641, %v604, 0
  %v652 = vsel %vm641, %v605, 0
  %v655 = vsel %vm641, %v606, 0
  %v658 = vsel %vm641, %v607, 0
  %v661 = vsel %vm641, %v608, 0
  %v664 = vsel %vm641, %v609, 0
  %666 = vmatprep.subr.mxu0 %v587
  %667 = vmatpush1.msra.mxu0 %v586
  %668 = vmatprep.subr.mxu0 %v595
  %669 = vmatpush1.msra.mxu0 %v594
  %670 = vmatprep.subr.mxu0 %v646
  %671 = vmatpush1.msra.mxu0 %v643
  %672 = vmatprep.subr.mxu0 0.0
  %673 = vmatpush1.msra.mxu0 0.0
  %674 = vmatprep.subr.mxu0 0.0
  %675 = vmatpush1.msra.mxu0 0.0
  %676 = vmatprep.subr.mxu0 0.0
  %677 = vmatpush1.msra.mxu0 0.0
  %678 = vmatprep.subr.mxu0 0.0
  %679 = vmatpush1.msra.mxu0 0.0
  %680 = vmatprep.subr.mxu0 0.0
  %681 = vmatpush1.msra.mxu0 0.0
  %682 = vmatprep.subr.mxu0 0.0
  %683 = vmatpush1.msra.mxu0 0.0
  %684 = vmatprep.subr.mxu0 0.0
  %685 = vmatpush1.msra.mxu0 0.0
  %686 = vmatprep.subr.mxu0 0.0
  %687 = vmatpush1.msra.mxu0 0.0
  %688 = vmatprep.subr.mxu0 0.0
  %689 = vmatpush1.msra.mxu0 0.0
  %690 = vmatprep.subr.mxu0 0.0
  %691 = vmatpush1.msra.mxu0 0.0
  %692 = vmatprep.subr.mxu0 0.0
  %693 = vmatpush1.msra.mxu0 0.0
  %694 = vmatprep.subr.mxu0 0.0
  %695 = vmatpush1.msra.mxu0 0.0
  %696 = vmatprep.subr.mxu0 0.0
  %697 = vmatpush1.msra.mxu0 0.0
  %698 = vmatprep.subr.mxu0 0.0
  %699 = vmatpush1.msra.mxu0 0.0
  %700 = vmatprep.subr.mxu0 0.0
  %701 = vmatpush1.msra.mxu0 0.0
  %702 = vmatprep.subr.mxu0 0.0
  %703 = vmatpush1.msra.mxu0 0.0
  %704 = vmatprep.subr.mxu0 0.0
  %705 = vmatpush1.msra.mxu0 0.0
  %706 = vmatprep.subr.mxu0 0.0
  %707 = vmatpush1.msra.mxu0 0.0
  %708 = vmatprep.subr.mxu0 0.0
  %709 = vmatpush1.msra.mxu0 0.0
  %710 = vmatprep.subr.mxu0 0.0
  %711 = vmatpush1.msra.mxu0 0.0
  %712 = vmatprep.subr.mxu0 0.0
  %713 = vmatpush1.msra.mxu0 0.0
  %714 = vmatprep.subr.mxu0 0.0
  %715 = vmatpush1.msra.mxu0 0.0
  %716 = vmatprep.subr.mxu0 0.0
  %717 = vmatpush1.msra.mxu0 0.0
  %718 = vmatprep.subr.mxu0 0.0
  %719 = vmatpush1.msra.mxu0 0.0
  %720 = vmatprep.subr.mxu0 0.0
  %721 = vmatpush1.msra.mxu0 0.0
  %722 = vmatprep.subr.mxu0 0.0
  %723 = vmatpush1.msra.mxu0 0.0
  %724 = vmatprep.subr.mxu0 0.0
  %725 = vmatpush1.msra.mxu0 0.0
  %726 = vmatprep.subr.mxu0 0.0
  %727 = vmatpush1.msra.mxu0 0.0
  %728 = vmatprep.subr.mxu0 0.0
  %729 = vmatpush1.msra.mxu0 0.0
  %730 = vmatprep.mubr.f32.mxu0 0.0
  %731 = vmatmul.mubr.f32.gmra.mrb[0].mxu0 %v633
  %v732 = vpop.f32.mrb[0].mxu0
  %v733 = vadd.f32 %v619, %v732
  %v734 = vpop.f32.mrb[0].mxu0
  %v735 = vadd.f32 %v619, %v734
  %736 = vmatprep.mubr.f32.mxu0 0.0
  %737 = vmatmul.mubr.f32.gmra.mrb[0].mxu0 %v636
  %v738 = vpop.f32.mrb[0].mxu0
  %v739 = vadd.f32 %v624, %v738
  %v740 = vpop.f32.mrb[0].mxu0
  %v741 = vadd.f32 %v624, %v740
  %742 = vmatprep.mubr.f32.mxu0 0.0
  %743 = vmatmul.mubr.f32.gmra.mrb[0].mxu0 %v639
  %v744 = vpop.f32.mrb[0].mxu0
  %v745 = vadd.f32 %v629, %v744
  %v746 = vpop.f32.mrb[0].mxu0
  %v747 = vadd.f32 %v629, %v746
  %748 = vdwg.mxu0
  %749 = vmatprep.subr.mxu0 %v589
  %750 = vmatpush1.msra.mxu0 %v588
  %751 = vmatprep.subr.mxu0 %v597
  %752 = vmatpush1.msra.mxu0 %v596
  %753 = vmatprep.subr.mxu0 %v652
  %754 = vmatpush1.msra.mxu0 %v649
  %755 = vmatprep.subr.mxu0 0.0
  %756 = vmatpush1.msra.mxu0 0.0
  %757 = vmatprep.subr.mxu0 0.0
  %758 = vmatpush1.msra.mxu0 0.0
  %759 = vmatprep.subr.mxu0 0.0
  %760 = vmatpush1.msra.mxu0 0.0
  %761 = vmatprep.subr.mxu0 0.0
  %762 = vmatpush1.msra.mxu0 0.0
  %763 = vmatprep.subr.mxu0 0.0
  %764 = vmatpush1.msra.mxu0 0.0
  %765 = vmatprep.subr.mxu0 0.0
  %766 = vmatpush1.msra.mxu0 0.0
  %767 = vmatprep.subr.mxu0 0.0
  %768 = vmatpush1.msra.mxu0 0.0
  %769 = vmatprep.subr.mxu0 0.0
  %770 = vmatpush1.msra.mxu0 0.0
  %771 = vmatprep.subr.mxu0 0.0
  %772 = vmatpush1.msra.mxu0 0.0
  %773 = vmatprep.subr.mxu0 0.0
  %774 = vmatpush1.msra.mxu0 0.0
  %775 = vmatprep.subr.mxu0 0.0
  %776 = vmatpush1.msra.mxu0 0.0
  %777 = vmatprep.subr.mxu0 0.0
  %778 = vmatpush1.msra.mxu0 0.0
  %779 = vmatprep.subr.mxu0 0.0
  %780 = vmatpush1.msra.mxu0 0.0
  %781 = vmatprep.subr.mxu0 0.0
  %782 = vmatpush1.msra.mxu0 0.0
  %783 = vmatprep.subr.mxu0 0.0
  %784 = vmatpush1.msra.mxu0 0.0
  %785 = vmatprep.subr.mxu0 0.0
  %786 = vmatpush1.msra.mxu0 0.0
  %787 = vmatprep.subr.mxu0 0.0
  %788 = vmatpush1.msra.mxu0 0.0
  %789 = vmatprep.subr.mxu0 0.0
  %790 = vmatpush1.msra.mxu0 0.0
  %791 = vmatprep.subr.mxu0 0.0
  %792 = vmatpush1.msra.mxu0 0.0
  %793 = vmatprep.subr.mxu0 0.0
  %794 = vmatpush1.msra.mxu0 0.0
  %795 = vmatprep.subr.mxu0 0.0
  %796 = vmatpush1.msra.mxu0 0.0
  %797 = vmatprep.subr.mxu0 0.0
  %798 = vmatpush1.msra.mxu0 0.0
  %799 = vmatprep.subr.mxu0 0.0
  %800 = vmatpush1.msra.mxu0 0.0
  %801 = vmatprep.subr.mxu0 0.0
  %802 = vmatpush1.msra.mxu0 0.0
  %803 = vmatprep.subr.mxu0 0.0
  %804 = vmatpush1.msra.mxu0 0.0
  %805 = vmatprep.subr.mxu0 0.0
  %806 = vmatpush1.msra.mxu0 0.0
  %807 = vmatprep.subr.mxu0 0.0
  %808 = vmatpush1.msra.mxu0 0.0
  %809 = vmatprep.subr.mxu0 0.0
  %810 = vmatpush1.msra.mxu0 0.0
  %811 = vmatprep.subr.mxu0 0.0
  %812 = vmatpush1.msra.mxu0 0.0
  %813 = vmatprep.mubr.f32.mxu0 0.0
  %814 = vmatmul.mubr.f32.gmra.mrb[0].mxu0 %v633
  %v815 = vpop.f32.mrb[0].mxu0
  %v816 = vadd.f32 %v619, %v815
  %v817 = vpop.f32.mrb[0].mxu0
  %v818 = vadd.f32 %v619, %v817
  %819 = vmatprep.mubr.f32.mxu0 0.0
  %820 = vmatmul.mubr.f32.gmra.mrb[0].mxu0 %v636
  %v821 = vpop.f32.mrb[0].mxu0
  %v822 = vadd.f32 %v624, %v821
  %v823 = vpop.f32.mrb[0].mxu0
  %v824 = vadd.f32 %v624, %v823
  %825 = vmatprep.mubr.f32.mxu0 0.0
  %826 = vmatmul.mubr.f32.gmra.mrb[0].mxu0 %v639
  %v827 = vpop.f32.mrb[0].mxu0
  %v828 = vadd.f32 %v629, %v827
  %v829 = vpop.f32.mrb[0].mxu0
  %v830 = vadd.f32 %v629, %v829
  %831 = vdwg.mxu0
  %832 = vmatprep.subr.mxu0 %v591
  %833 = vmatpush1.msra.mxu0 %v590
  %834 = vmatprep.subr.mxu0 %v599
  %835 = vmatpush1.msra.mxu0 %v598
  %836 = vmatprep.subr.mxu0 %v658
  %837 = vmatpush1.msra.mxu0 %v655
  %838 = vmatprep.subr.mxu0 0.0
  %839 = vmatpush1.msra.mxu0 0.0
  %840 = vmatprep.subr.mxu0 0.0
  %841 = vmatpush1.msra.mxu0 0.0
  %842 = vmatprep.subr.mxu0 0.0
  %843 = vmatpush1.msra.mxu0 0.0
  %844 = vmatprep.subr.mxu0 0.0
  %845 = vmatpush1.msra.mxu0 0.0
  %846 = vmatprep.subr.mxu0 0.0
  %847 = vmatpush1.msra.mxu0 0.0
  %848 = vmatprep.subr.mxu0 0.0
  %849 = vmatpush1.msra.mxu0 0.0
  %850 = vmatprep.subr.mxu0 0.0
  %851 = vmatpush1.msra.mxu0 0.0
  %852 = vmatprep.subr.mxu0 0.0
  %853 = vmatpush1.msra.mxu0 0.0
  %854 = vmatprep.subr.mxu0 0.0
  %855 = vmatpush1.msra.mxu0 0.0
  %856 = vmatprep.subr.mxu0 0.0
  %857 = vmatpush1.msra.mxu0 0.0
  %858 = vmatprep.subr.mxu0 0.0
  %859 = vmatpush1.msra.mxu0 0.0
  %860 = vmatprep.subr.mxu0 0.0
  %861 = vmatpush1.msra.mxu0 0.0
  %862 = vmatprep.subr.mxu0 0.0
  %863 = vmatpush1.msra.mxu0 0.0
  %864 = vmatprep.subr.mxu0 0.0
  %865 = vmatpush1.msra.mxu0 0.0
  %866 = vmatprep.subr.mxu0 0.0
  %867 = vmatpush1.msra.mxu0 0.0
  %868 = vmatprep.subr.mxu0 0.0
  %869 = vmatpush1.msra.mxu0 0.0
  %870 = vmatprep.subr.mxu0 0.0
  %871 = vmatpush1.msra.mxu0 0.0
  %872 = vmatprep.subr.mxu0 0.0
  %873 = vmatpush1.msra.mxu0 0.0
  %874 = vmatprep.subr.mxu0 0.0
  %875 = vmatpush1.msra.mxu0 0.0
  %876 = vmatprep.subr.mxu0 0.0
  %877 = vmatpush1.msra.mxu0 0.0
  %878 = vmatprep.subr.mxu0 0.0
  %879 = vmatpush1.msra.mxu0 0.0
  %880 = vmatprep.subr.mxu0 0.0
  %881 = vmatpush1.msra.mxu0 0.0
  %882 = vmatprep.subr.mxu0 0.0
  %883 = vmatpush1.msra.mxu0 0.0
  %884 = vmatprep.subr.mxu0 0.0
  %885 = vmatpush1.msra.mxu0 0.0
  %886 = vmatprep.subr.mxu0 0.0
  %887 = vmatpush1.msra.mxu0 0.0
  %888 = vmatprep.subr.mxu0 0.0
  %889 = vmatpush1.msra.mxu0 0.0
  %890 = vmatprep.subr.mxu0 0.0
  %891 = vmatpush1.msra.mxu0 0.0
  %892 = vmatprep.subr.mxu0 0.0
  %893 = vmatpush1.msra.mxu0 0.0
  %894 = vmatprep.subr.mxu0 0.0
  %895 = vmatpush1.msra.mxu0 0.0
  %896 = vmatprep.mubr.f32.mxu0 0.0
  %897 = vmatmul.mubr.f32.gmra.mrb[0].mxu0 %v633
  %v898 = vpop.f32.mrb[0].mxu0
  %v899 = vadd.f32 %v619, %v898
  %v900 = vpop.f32.mrb[0].mxu0
  %v901 = vadd.f32 %v619, %v900
  %902 = vmatprep.mubr.f32.mxu0 0.0
  %903 = vmatmul.mubr.f32.gmra.mrb[0].mxu0 %v636
  %v904 = vpop.f32.mrb[0].mxu0
  %v905 = vadd.f32 %v624, %v904
  %v906 = vpop.f32.mrb[0].mxu0
  %v907 = vadd.f32 %v624, %v906
  %908 = vmatprep.mubr.f32.mxu0 0.0
  %909 = vmatmul.mubr.f32.gmra.mrb[0].mxu0 %v639
  %v910 = vpop.f32.mrb[0].mxu0
  %v911 = vadd.f32 %v629, %v910
  %v912 = vpop.f32.mrb[0].mxu0
  %v913 = vadd.f32 %v629, %v912
  %914 = vdwg.mxu0
  %915 = vmatprep.subr.mxu0 %v593
  %916 = vmatpush1.msra.mxu0 %v592
  %917 = vmatprep.subr.mxu0 %v601
  %918 = vmatpush1.msra.mxu0 %v600
  %919 = vmatprep.subr.mxu0 %v664
  %920 = vmatpush1.msra.mxu0 %v661
  %921 = vmatprep.subr.mxu0 0.0
  %922 = vmatpush1.msra.mxu0 0.0
  %923 = vmatprep.subr.mxu0 0.0
  %924 = vmatpush1.msra.mxu0 0.0
  %925 = vmatprep.subr.mxu0 0.0
  %926 = vmatpush1.msra.mxu0 0.0
  %927 = vmatprep.subr.mxu0 0.0
  %928 = vmatpush1.msra.mxu0 0.0
  %929 = vmatprep.subr.mxu0 0.0
  %930 = vmatpush1.msra.mxu0 0.0
  %931 = vmatprep.subr.mxu0 0.0
  %932 = vmatpush1.msra.mxu0 0.0
  %933 = vmatprep.subr.mxu0 0.0
  %934 = vmatpush1.msra.mxu0 0.0
  %935 = vmatprep.subr.mxu0 0.0
  %936 = vmatpush1.msra.mxu0 0.0
  %937 = vmatprep.subr.mxu0 0.0
  %938 = vmatpush1.msra.mxu0 0.0
  %939 = vmatprep.subr.mxu0 0.0
  %940 = vmatpush1.msra.mxu0 0.0
  %941 = vmatprep.subr.mxu0 0.0
  %942 = vmatpush1.msra.mxu0 0.0
  %943 = vmatprep.subr.mxu0 0.0
  %944 = vmatpush1.msra.mxu0 0.0
  %945 = vmatprep.subr.mxu0 0.0
  %946 = vmatpush1.msra.mxu0 0.0
  %947 = vmatprep.subr.mxu0 0.0
  %948 = vmatpush1.msra.mxu0 0.0
  %949 = vmatprep.subr.mxu0 0.0
  %950 = vmatpush1.msra.mxu0 0.0
  %951 = vmatprep.subr.mxu0 0.0
  %952 = vmatpush1.msra.mxu0 0.0
  %953 = vmatprep.subr.mxu0 0.0
  %954 = vmatpush1.msra.mxu0 0.0
  %955 = vmatprep.subr.mxu0 0.0
  %956 = vmatpush1.msra.mxu0 0.0
  %957 = vmatprep.subr.mxu0 0.0
  %958 = vmatpush1.msra.mxu0 0.0
  %959 = vmatprep.subr.mxu0 0.0
  %960 = vmatpush1.msra.mxu0 0.0
  %961 = vmatprep.subr.mxu0 0.0
  %962 = vmatpush1.msra.mxu0 0.0
  %963 = vmatprep.subr.mxu0 0.0
  %964 = vmatpush1.msra.mxu0 0.0
  %965 = vmatprep.subr.mxu0 0.0
  %966 = vmatpush1.msra.mxu0 0.0
  %967 = vmatprep.subr.mxu0 0.0
  %968 = vmatpush1.msra.mxu0 0.0
  %969 = vmatprep.subr.mxu0 0.0
  %970 = vmatpush1.msra.mxu0 0.0
  %971 = vmatprep.subr.mxu0 0.0
  %972 = vmatpush1.msra.mxu0 0.0
  %973 = vmatprep.subr.mxu0 0.0
  %974 = vmatpush1.msra.mxu0 0.0
  %975 = vmatprep.subr.mxu0 0.0
  %976 = vmatpush1.msra.mxu0 0.0
  %977 = vmatprep.subr.mxu0 0.0
  %978 = vmatpush1.msra.mxu0 0.0
  %979 = vmatprep.mubr.f32.mxu0 0.0
  %980 = vmatmul.mubr.f32.gmra.mrb[0].mxu0 %v633
  %v981 = vpop.f32.mrb[0].mxu0
  %v982 = vadd.f32 %v619, %v981
  %v983 = vpop.f32.mrb[0].mxu0
  %v984 = vadd.f32 %v619, %v983
  %985 = vmatprep.mubr.f32.mxu0 0.0
  %986 = vmatmul.mubr.f32.gmra.mrb[0].mxu0 %v636
  %v987 = vpop.f32.mrb[0].mxu0
  %v988 = vadd.f32 %v624, %v987
  %v989 = vpop.f32.mrb[0].mxu0
  %v990 = vadd.f32 %v624, %v989
  %991 = vmatprep.mubr.f32.mxu0 0.0
  %992 = vmatmul.mubr.f32.gmra.mrb[0].mxu0 %v639
  %v993 = vpop.f32.mrb[0].mxu0
  %v994 = vadd.f32 %v629, %v993
  %v995 = vpop.f32.mrb[0].mxu0
  %v996 = vadd.f32 %v629, %v995
  %997 = vdwg.mxu0
  %v998 = vmax.f32 %v733, 0.0
  %v999 = vmax.f32 %v735, 0.0
  %v1000 = vmax.f32 %v816, 0.0
  %v1001 = vmax.f32 %v818, 0.0
  %v1002 = vmax.f32 %v899, 0.0
  %v1003 = vmax.f32 %v901, 0.0
  %v1004 = vmax.f32 %v982, 0.0
  %v1005 = vmax.f32 %v984, 0.0
  %v1006 = vmax.f32 %v739, 0.0
  %v1007 = vmax.f32 %v741, 0.0
  %v1008 = vmax.f32 %v822, 0.0
  %v1009 = vmax.f32 %v824, 0.0
  %v1010 = vmax.f32 %v905, 0.0
  %v1011 = vmax.f32 %v907, 0.0
  %v1012 = vmax.f32 %v988, 0.0
  %v1013 = vmax.f32 %v990, 0.0
  %v1014 = vmax.f32 %v745, 0.0
  %v1015 = vmax.f32 %v747, 0.0
  %v1016 = vmax.f32 %v828, 0.0
  %v1017 = vmax.f32 %v830, 0.0
  %v1018 = vmax.f32 %v911, 0.0
  %v1019 = vmax.f32 %v913, 0.0
  %v1020 = vmax.f32 %v994, 0.0
  %v1021 = vmax.f32 %v996, 0.0
  %v1022 = vld [vmem:[%s5] sm:$0x7]
  %v1023 = vld [vmem:[%s6] sm:$0x7]
  %1025 = vset.pattern.permute.xlu0 0
  %1026 = vperm.xlu0 %1025, %v1023
  %v1027 = vpop.permute.xlu0 %1026
  %v1030 = vsel %vm631, %v1022, 0
  %v1033 = vsel %vm641, %v1014, 0
  %v1036 = vsel %vm641, %v1015, 0
  %v1039 = vsel %vm641, %v1016, 0
  %v1042 = vsel %vm641, %v1017, 0
  %v1045 = vsel %vm641, %v1018, 0
  %v1048 = vsel %vm641, %v1019, 0
  %v1051 = vsel %vm641, %v1020, 0
  %v1054 = vsel %vm641, %v1021, 0
  %1056 = vmatprep.subr.mxu0 %v999
  %1057 = vmatpush1.msra.mxu0 %v998
  %1058 = vmatprep.subr.mxu0 %v1007
  %1059 = vmatpush1.msra.mxu0 %v1006
  %1060 = vmatprep.subr.mxu0 %v1036
  %1061 = vmatpush1.msra.mxu0 %v1033
  %1062 = vmatprep.subr.mxu0 0.0
  %1063 = vmatpush1.msra.mxu0 0.0
  %1064 = vmatprep.subr.mxu0 0.0
  %1065 = vmatpush1.msra.mxu0 0.0
  %1066 = vmatprep.subr.mxu0 0.0
  %1067 = vmatpush1.msra.mxu0 0.0
  %1068 = vmatprep.subr.mxu0 0.0
  %1069 = vmatpush1.msra.mxu0 0.0
  %1070 = vmatprep.subr.mxu0 0.0
  %1071 = vmatpush1.msra.mxu0 0.0
  %1072 = vmatprep.subr.mxu0 0.0
  %1073 = vmatpush1.msra.mxu0 0.0
  %1074 = vmatprep.subr.mxu0 0.0
  %1075 = vmatpush1.msra.mxu0 0.0
  %1076 = vmatprep.subr.mxu0 0.0
  %1077 = vmatpush1.msra.mxu0 0.0
  %1078 = vmatprep.subr.mxu0 0.0
  %1079 = vmatpush1.msra.mxu0 0.0
  %1080 = vmatprep.subr.mxu0 0.0
  %1081 = vmatpush1.msra.mxu0 0.0
  %1082 = vmatprep.subr.mxu0 0.0
  %1083 = vmatpush1.msra.mxu0 0.0
  %1084 = vmatprep.subr.mxu0 0.0
  %1085 = vmatpush1.msra.mxu0 0.0
  %1086 = vmatprep.subr.mxu0 0.0
  %1087 = vmatpush1.msra.mxu0 0.0
  %1088 = vmatprep.subr.mxu0 0.0
  %1089 = vmatpush1.msra.mxu0 0.0
  %1090 = vmatprep.subr.mxu0 0.0
  %1091 = vmatpush1.msra.mxu0 0.0
  %1092 = vmatprep.subr.mxu0 0.0
  %1093 = vmatpush1.msra.mxu0 0.0
  %1094 = vmatprep.subr.mxu0 0.0
  %1095 = vmatpush1.msra.mxu0 0.0
  %1096 = vmatprep.subr.mxu0 0.0
  %1097 = vmatpush1.msra.mxu0 0.0
  %1098 = vmatprep.subr.mxu0 0.0
  %1099 = vmatpush1.msra.mxu0 0.0
  %1100 = vmatprep.subr.mxu0 0.0
  %1101 = vmatpush1.msra.mxu0 0.0
  %1102 = vmatprep.subr.mxu0 0.0
  %1103 = vmatpush1.msra.mxu0 0.0
  %1104 = vmatprep.subr.mxu0 0.0
  %1105 = vmatpush1.msra.mxu0 0.0
  %1106 = vmatprep.subr.mxu0 0.0
  %1107 = vmatpush1.msra.mxu0 0.0
  %1108 = vmatprep.subr.mxu0 0.0
  %1109 = vmatpush1.msra.mxu0 0.0
  %1110 = vmatprep.subr.mxu0 0.0
  %1111 = vmatpush1.msra.mxu0 0.0
  %1112 = vmatprep.subr.mxu0 0.0
  %1113 = vmatpush1.msra.mxu0 0.0
  %1114 = vmatprep.subr.mxu0 0.0
  %1115 = vmatpush1.msra.mxu0 0.0
  %1116 = vmatprep.subr.mxu0 0.0
  %1117 = vmatpush1.msra.mxu0 0.0
  %1118 = vmatprep.subr.mxu0 0.0
  %1119 = vmatpush1.msra.mxu0 0.0
  %1120 = vmatprep.mubr.f32.mxu0 0.0
  %1121 = vmatmul.mubr.f32.gmra.mrb[0].mxu0 %v1030
  %v1122 = vpop.f32.mrb[0].mxu0
  %v1123 = vadd.f32 %v1027, %v1122
  %v1124 = vpop.f32.mrb[0].mxu0
  %v1125 = vadd.f32 %v1027, %v1124
  %1126 = vdwg.mxu0
  %1127 = vmatprep.subr.mxu0 %v1001
  %1128 = vmatpush1.msra.mxu0 %v1000
  %1129 = vmatprep.subr.mxu0 %v1009
  %1130 = vmatpush1.msra.mxu0 %v1008
  %1131 = vmatprep.subr.mxu0 %v1042
  %1132 = vmatpush1.msra.mxu0 %v1039
  %1133 = vmatprep.subr.mxu0 0.0
  %1134 = vmatpush1.msra.mxu0 0.0
  %1135 = vmatprep.subr.mxu0 0.0
  %1136 = vmatpush1.msra.mxu0 0.0
  %1137 = vmatprep.subr.mxu0 0.0
  %1138 = vmatpush1.msra.mxu0 0.0
  %1139 = vmatprep.subr.mxu0 0.0
  %1140 = vmatpush1.msra.mxu0 0.0
  %1141 = vmatprep.subr.mxu0 0.0
  %1142 = vmatpush1.msra.mxu0 0.0
  %1143 = vmatprep.subr.mxu0 0.0
  %1144 = vmatpush1.msra.mxu0 0.0
  %1145 = vmatprep.subr.mxu0 0.0
  %1146 = vmatpush1.msra.mxu0 0.0
  %1147 = vmatprep.subr.mxu0 0.0
  %1148 = vmatpush1.msra.mxu0 0.0
  %1149 = vmatprep.subr.mxu0 0.0
  %1150 = vmatpush1.msra.mxu0 0.0
  %1151 = vmatprep.subr.mxu0 0.0
  %1152 = vmatpush1.msra.mxu0 0.0
  %1153 = vmatprep.subr.mxu0 0.0
  %1154 = vmatpush1.msra.mxu0 0.0
  %1155 = vmatprep.subr.mxu0 0.0
  %1156 = vmatpush1.msra.mxu0 0.0
  %1157 = vmatprep.subr.mxu0 0.0
  %1158 = vmatpush1.msra.mxu0 0.0
  %1159 = vmatprep.subr.mxu0 0.0
  %1160 = vmatpush1.msra.mxu0 0.0
  %1161 = vmatprep.subr.mxu0 0.0
  %1162 = vmatpush1.msra.mxu0 0.0
  %1163 = vmatprep.subr.mxu0 0.0
  %1164 = vmatpush1.msra.mxu0 0.0
  %1165 = vmatprep.subr.mxu0 0.0
  %1166 = vmatpush1.msra.mxu0 0.0
  %1167 = vmatprep.subr.mxu0 0.0
  %1168 = vmatpush1.msra.mxu0 0.0
  %1169 = vmatprep.subr.mxu0 0.0
  %1170 = vmatpush1.msra.mxu0 0.0
  %1171 = vmatprep.subr.mxu0 0.0
  %1172 = vmatpush1.msra.mxu0 0.0
  %1173 = vmatprep.subr.mxu0 0.0
  %1174 = vmatpush1.msra.mxu0 0.0
  %1175 = vmatprep.subr.mxu0 0.0
  %1176 = vmatpush1.msra.mxu0 0.0
  %1177 = vmatprep.subr.mxu0 0.0
  %1178 = vmatpush1.msra.mxu0 0.0
  %1179 = vmatprep.subr.mxu0 0.0
  %1180 = vmatpush1.msra.mxu0 0.0
  %1181 = vmatprep.subr.mxu0 0.0
  %1182 = vmatpush1.msra.mxu0 0.0
  %1183 = vmatprep.subr.mxu0 0.0
  %1184 = vmatpush1.msra.mxu0 0.0
  %1185 = vmatprep.subr.mxu0 0.0
  %1186 = vmatpush1.msra.mxu0 0.0
  %1187 = vmatprep.subr.mxu0 0.0
  %1188 = vmatpush1.msra.mxu0 0.0
  %1189 = vmatprep.subr.mxu0 0.0
  %1190 = vmatpush1.msra.mxu0 0.0
  %1191 = vmatprep.mubr.f32.mxu0 0.0
  %1192 = vmatmul.mubr.f32.gmra.mrb[0].mxu0 %v1030
  %v1193 = vpop.f32.mrb[0].mxu0
  %v1194 = vadd.f32 %v1027, %v1193
  %v1195 = vpop.f32.mrb[0].mxu0
  %v1196 = vadd.f32 %v1027, %v1195
  %1197 = vdwg.mxu0
  %1198 = vmatprep.subr.mxu0 %v1003
  %1199 = vmatpush1.msra.mxu0 %v1002
  %1200 = vmatprep.subr.mxu0 %v1011
  %1201 = vmatpush1.msra.mxu0 %v1010
  %1202 = vmatprep.subr.mxu0 %v1048
  %1203 = vmatpush1.msra.mxu0 %v1045
  %1204 = vmatprep.subr.mxu0 0.0
  %1205 = vmatpush1.msra.mxu0 0.0
  %1206 = vmatprep.subr.mxu0 0.0
  %1207 = vmatpush1.msra.mxu0 0.0
  %1208 = vmatprep.subr.mxu0 0.0
  %1209 = vmatpush1.msra.mxu0 0.0
  %1210 = vmatprep.subr.mxu0 0.0
  %1211 = vmatpush1.msra.mxu0 0.0
  %1212 = vmatprep.subr.mxu0 0.0
  %1213 = vmatpush1.msra.mxu0 0.0
  %1214 = vmatprep.subr.mxu0 0.0
  %1215 = vmatpush1.msra.mxu0 0.0
  %1216 = vmatprep.subr.mxu0 0.0
  %1217 = vmatpush1.msra.mxu0 0.0
  %1218 = vmatprep.subr.mxu0 0.0
  %1219 = vmatpush1.msra.mxu0 0.0
  %1220 = vmatprep.subr.mxu0 0.0
  %1221 = vmatpush1.msra.mxu0 0.0
  %1222 = vmatprep.subr.mxu0 0.0
  %1223 = vmatpush1.msra.mxu0 0.0
  %1224 = vmatprep.subr.mxu0 0.0
  %1225 = vmatpush1.msra.mxu0 0.0
  %1226 = vmatprep.subr.mxu0 0.0
  %1227 = vmatpush1.msra.mxu0 0.0
  %1228 = vmatprep.subr.mxu0 0.0
  %1229 = vmatpush1.msra.mxu0 0.0
  %1230 = vmatprep.subr.mxu0 0.0
  %1231 = vmatpush1.msra.mxu0 0.0
  %1232 = vmatprep.subr.mxu0 0.0
  %1233 = vmatpush1.msra.mxu0 0.0
  %1234 = vmatprep.subr.mxu0 0.0
  %1235 = vmatpush1.msra.mxu0 0.0
  %1236 = vmatprep.subr.mxu0 0.0
  %1237 = vmatpush1.msra.mxu0 0.0
  %1238 = vmatprep.subr.mxu0 0.0
  %1239 = vmatpush1.msra.mxu0 0.0
  %1240 = vmatprep.subr.mxu0 0.0
  %1241 = vmatpush1.msra.mxu0 0.0
  %1242 = vmatprep.subr.mxu0 0.0
  %1243 = vmatpush1.msra.mxu0 0.0
  %1244 = vmatprep.subr.mxu0 0.0
  %1245 = vmatpush1.msra.mxu0 0.0
  %1246 = vmatprep.subr.mxu0 0.0
  %1247 = vmatpush1.msra.mxu0 0.0
  %1248 = vmatprep.subr.mxu0 0.0
  %1249 = vmatpush1.msra.mxu0 0.0
  %1250 = vmatprep.subr.mxu0 0.0
  %1251 = vmatpush1.msra.mxu0 0.0
  %1252 = vmatprep.subr.mxu0 0.0
  %1253 = vmatpush1.msra.mxu0 0.0
  %1254 = vmatprep.subr.mxu0 0.0
  %1255 = vmatpush1.msra.mxu0 0.0
  %1256 = vmatprep.subr.mxu0 0.0
  %1257 = vmatpush1.msra.mxu0 0.0
  %1258 = vmatprep.subr.mxu0 0.0
  %1259 = vmatpush1.msra.mxu0 0.0
  %1260 = vmatprep.subr.mxu0 0.0
  %1261 = vmatpush1.msra.mxu0 0.0
  %1262 = vmatprep.mubr.f32.mxu0 0.0
  %1263 = vmatmul.mubr.f32.gmra.mrb[0].mxu0 %v1030
  %v1264 = vpop.f32.mrb[0].mxu0
  %v1265 = vadd.f32 %v1027, %v1264
  %v1266 = vpop.f32.mrb[0].mxu0
  %v1267 = vadd.f32 %v1027, %v1266
  %1268 = vdwg.mxu0
  %1269 = vmatprep.subr.mxu0 %v1005
  %1270 = vmatpush1.msra.mxu0 %v1004
  %1271 = vmatprep.subr.mxu0 %v1013
  %1272 = vmatpush1.msra.mxu0 %v1012
  %1273 = vmatprep.subr.mxu0 %v1054
  %1274 = vmatpush1.msra.mxu0 %v1051
  %1275 = vmatprep.subr.mxu0 0.0
  %1276 = vmatpush1.msra.mxu0 0.0
  %1277 = vmatprep.subr.mxu0 0.0
  %1278 = vmatpush1.msra.mxu0 0.0
  %1279 = vmatprep.subr.mxu0 0.0
  %1280 = vmatpush1.msra.mxu0 0.0
  %1281 = vmatprep.subr.mxu0 0.0
  %1282 = vmatpush1.msra.mxu0 0.0
  %1283 = vmatprep.subr.mxu0 0.0
  %1284 = vmatpush1.msra.mxu0 0.0
  %1285 = vmatprep.subr.mxu0 0.0
  %1286 = vmatpush1.msra.mxu0 0.0
  %1287 = vmatprep.subr.mxu0 0.0
  %1288 = vmatpush1.msra.mxu0 0.0
  %1289 = vmatprep.subr.mxu0 0.0
  %1290 = vmatpush1.msra.mxu0 0.0
  %1291 = vmatprep.subr.mxu0 0.0
  %1292 = vmatpush1.msra.mxu0 0.0
  %1293 = vmatprep.subr.mxu0 0.0
  %1294 = vmatpush1.msra.mxu0 0.0
  %1295 = vmatprep.subr.mxu0 0.0
  %1296 = vmatpush1.msra.mxu0 0.0
  %1297 = vmatprep.subr.mxu0 0.0
  %1298 = vmatpush1.msra.mxu0 0.0
  %1299 = vmatprep.subr.mxu0 0.0
  %1300 = vmatpush1.msra.mxu0 0.0
  %1301 = vmatprep.subr.mxu0 0.0
  %1302 = vmatpush1.msra.mxu0 0.0
  %1303 = vmatprep.subr.mxu0 0.0
  %1304 = vmatpush1.msra.mxu0 0.0
  %1305 = vmatprep.subr.mxu0 0.0
  %1306 = vmatpush1.msra.mxu0 0.0
  %1307 = vmatprep.subr.mxu0 0.0
  %1308 = vmatpush1.msra.mxu0 0.0
  %1309 = vmatprep.subr.mxu0 0.0
  %1310 = vmatpush1.msra.mxu0 0.0
  %1311 = vmatprep.subr.mxu0 0.0
  %1312 = vmatpush1.msra.mxu0 0.0
  %1313 = vmatprep.subr.mxu0 0.0
  %1314 = vmatpush1.msra.mxu0 0.0
  %1315 = vmatprep.subr.mxu0 0.0
  %1316 = vmatpush1.msra.mxu0 0.0
  %1317 = vmatprep.subr.mxu0 0.0
  %1318 = vmatpush1.msra.mxu0 0.0
  %1319 = vmatprep.subr.mxu0 0.0
  %1320 = vmatpush1.msra.mxu0 0.0
  %1321 = vmatprep.subr.mxu0 0.0
  %1322 = vmatpush1.msra.mxu0 0.0
  %1323 = vmatprep.subr.mxu0 0.0
  %1324 = vmatpush1.msra.mxu0 0.0
  %1325 = vmatprep.subr.mxu0 0.0
  %1326 = vmatpush1.msra.mxu0 0.0
  %1327 = vmatprep.subr.mxu0 0.0
  %1328 = vmatpush1.msra.mxu0 0.0
  %1329 = vmatprep.subr.mxu0 0.0
  %1330 = vmatpush1.msra.mxu0 0.0
  %1331 = vmatprep.subr.mxu0 0.0
  %1332 = vmatpush1.msra.mxu0 0.0
  %1333 = vmatprep.mubr.f32.mxu0 0.0
  %1334 = vmatmul.mubr.f32.gmra.mrb[0].mxu0 %v1030
  %v1335 = vpop.f32.mrb[0].mxu0
  %v1336 = vadd.f32 %v1027, %v1335
  %v1337 = vpop.f32.mrb[0].mxu0
  %v1338 = vadd.f32 %v1027, %v1337
  %1339 = vdwg.mxu0
  %vm1340 = vcmask 1042432
  %v1341 = vsel %vm1340, %v1123, -inf
  %v1342 = vrot.slane %v1341, 4
  %v1343 = vmax.f32 %v1341, %v1342
  %v1344 = vrot.slane %v1343, 2
  %v1345 = vmax.f32 %v1343, %v1344
  %v1346 = vrot.slane %v1345, 1
  %v1347 = vmax.f32 %v1345, %v1346
  %v1348 = vsel %vm1340, %v1125, -inf
  %v1349 = vrot.slane %v1348, 4
  %v1350 = vmax.f32 %v1348, %v1349
  %v1351 = vrot.slane %v1350, 2
  %v1352 = vmax.f32 %v1350, %v1351
  %v1353 = vrot.slane %v1352, 1
  %v1354 = vmax.f32 %v1352, %v1353
  %v1355 = vsel %vm1340, %v1194, -inf
  %v1356 = vrot.slane %v1355, 4
  %v1357 = vmax.f32 %v1355, %v1356
  %v1358 = vrot.slane %v1357, 2
  %v1359 = vmax.f32 %v1357, %v1358
  %v1360 = vrot.slane %v1359, 1
  %v1361 = vmax.f32 %v1359, %v1360
  %v1362 = vsel %vm1340, %v1196, -inf
  %v1363 = vrot.slane %v1362, 4
  %v1364 = vmax.f32 %v1362, %v1363
  %v1365 = vrot.slane %v1364, 2
  %v1366 = vmax.f32 %v1364, %v1365
  %v1367 = vrot.slane %v1366, 1
  %v1368 = vmax.f32 %v1366, %v1367
  %v1369 = vsel %vm1340, %v1265, -inf
  %v1370 = vrot.slane %v1369, 4
  %v1371 = vmax.f32 %v1369, %v1370
  %v1372 = vrot.slane %v1371, 2
  %v1373 = vmax.f32 %v1371, %v1372
  %v1374 = vrot.slane %v1373, 1
  %v1375 = vmax.f32 %v1373, %v1374
  %v1376 = vsel %vm1340, %v1267, -inf
  %v1377 = vrot.slane %v1376, 4
  %v1378 = vmax.f32 %v1376, %v1377
  %v1379 = vrot.slane %v1378, 2
  %v1380 = vmax.f32 %v1378, %v1379
  %v1381 = vrot.slane %v1380, 1
  %v1382 = vmax.f32 %v1380, %v1381
  %v1383 = vsel %vm1340, %v1336, -inf
  %v1384 = vrot.slane %v1383, 4
  %v1385 = vmax.f32 %v1383, %v1384
  %v1386 = vrot.slane %v1385, 2
  %v1387 = vmax.f32 %v1385, %v1386
  %v1388 = vrot.slane %v1387, 1
  %v1389 = vmax.f32 %v1387, %v1388
  %v1390 = vsel %vm1340, %v1338, -inf
  %v1391 = vrot.slane %v1390, 4
  %v1392 = vmax.f32 %v1390, %v1391
  %v1393 = vrot.slane %v1392, 2
  %v1394 = vmax.f32 %v1392, %v1393
  %v1395 = vrot.slane %v1394, 1
  %v1396 = vmax.f32 %v1394, %v1395
  %v1397 = vsub.f32 %v1123, %v1347
  %v1398 = vsub.f32 %v1125, %v1354
  %v1399 = vsub.f32 %v1194, %v1361
  %v1400 = vsub.f32 %v1196, %v1368
  %v1401 = vsub.f32 %v1265, %v1375
  %v1402 = vsub.f32 %v1267, %v1382
  %v1403 = vsub.f32 %v1336, %v1389
  %v1404 = vsub.f32 %v1338, %v1396
  %v1405 = vmul.f32 %v1397, 1.442695
  %v1406 = vpow.pop %v1405
  %v1407 = vmul.f32 %v1398, 1.442695
  %v1408 = vpow.pop %v1407
  %v1409 = vmul.f32 %v1399, 1.442695
  %v1410 = vpow.pop %v1409
  %v1411 = vmul.f32 %v1400, 1.442695
  %v1412 = vpow.pop %v1411
  %v1413 = vmul.f32 %v1401, 1.442695
  %v1414 = vpow.pop %v1413
  %v1415 = vmul.f32 %v1402, 1.442695
  %v1416 = vpow.pop %v1415
  %v1417 = vmul.f32 %v1403, 1.442695
  %v1418 = vpow.pop %v1417
  %v1419 = vmul.f32 %v1404, 1.442695
  %v1420 = vpow.pop %v1419
  %v1421 = vsel %vm1340, %v1406, 0.0
  %v1422 = vrot.slane %v1421, 4
  %v1423 = vadd.f32 %v1421, %v1422
  %v1424 = vrot.slane %v1423, 2
  %v1425 = vadd.f32 %v1423, %v1424
  %v1426 = vrot.slane %v1425, 1
  %v1427 = vadd.f32 %v1425, %v1426
  %v1428 = vsel %vm1340, %v1408, 0.0
  %v1429 = vrot.slane %v1428, 4
  %v1430 = vadd.f32 %v1428, %v1429
  %v1431 = vrot.slane %v1430, 2
  %v1432 = vadd.f32 %v1430, %v1431
  %v1433 = vrot.slane %v1432, 1
  %v1434 = vadd.f32 %v1432, %v1433
  %v1435 = vsel %vm1340, %v1410, 0.0
  %v1436 = vrot.slane %v1435, 4
  %v1437 = vadd.f32 %v1435, %v1436
  %v1438 = vrot.slane %v1437, 2
  %v1439 = vadd.f32 %v1437, %v1438
  %v1440 = vrot.slane %v1439, 1
  %v1441 = vadd.f32 %v1439, %v1440
  %v1442 = vsel %vm1340, %v1412, 0.0
  %v1443 = vrot.slane %v1442, 4
  %v1444 = vadd.f32 %v1442, %v1443
  %v1445 = vrot.slane %v1444, 2
  %v1446 = vadd.f32 %v1444, %v1445
  %v1447 = vrot.slane %v1446, 1
  %v1448 = vadd.f32 %v1446, %v1447
  %v1449 = vsel %vm1340, %v1414, 0.0
  %v1450 = vrot.slane %v1449, 4
  %v1451 = vadd.f32 %v1449, %v1450
  %v1452 = vrot.slane %v1451, 2
  %v1453 = vadd.f32 %v1451, %v1452
  %v1454 = vrot.slane %v1453, 1
  %v1455 = vadd.f32 %v1453, %v1454
  %v1456 = vsel %vm1340, %v1416, 0.0
  %v1457 = vrot.slane %v1456, 4
  %v1458 = vadd.f32 %v1456, %v1457
  %v1459 = vrot.slane %v1458, 2
  %v1460 = vadd.f32 %v1458, %v1459
  %v1461 = vrot.slane %v1460, 1
  %v1462 = vadd.f32 %v1460, %v1461
  %v1463 = vsel %vm1340, %v1418, 0.0
  %v1464 = vrot.slane %v1463, 4
  %v1465 = vadd.f32 %v1463, %v1464
  %v1466 = vrot.slane %v1465, 2
  %v1467 = vadd.f32 %v1465, %v1466
  %v1468 = vrot.slane %v1467, 1
  %v1469 = vadd.f32 %v1467, %v1468
  %v1470 = vsel %vm1340, %v1420, 0.0
  %v1471 = vrot.slane %v1470, 4
  %v1472 = vadd.f32 %v1470, %v1471
  %v1473 = vrot.slane %v1472, 2
  %v1474 = vadd.f32 %v1472, %v1473
  %v1475 = vrot.slane %v1474, 1
  %v1476 = vadd.f32 %v1474, %v1475
  %v1477 = vrcp.pop %v1427
  %v1478 = vmul.f32 %v1406, %v1477
  %v1479 = vrcp.pop %v1434
  %v1480 = vmul.f32 %v1408, %v1479
  %v1481 = vrcp.pop %v1441
  %v1482 = vmul.f32 %v1410, %v1481
  %v1483 = vrcp.pop %v1448
  %v1484 = vmul.f32 %v1412, %v1483
  %v1485 = vrcp.pop %v1455
  %v1486 = vmul.f32 %v1414, %v1485
  %v1487 = vrcp.pop %v1462
  %v1488 = vmul.f32 %v1416, %v1487
  %v1489 = vrcp.pop %v1469
  %v1490 = vmul.f32 %v1418, %v1489
  %v1491 = vrcp.pop %v1476
  %v1492 = vmul.f32 %v1420, %v1491
  %v1501 = vcombine.low %v1478, %v1480
  %v1502 = vcombine.low %v1482, %v1484
  %v1503 = vcombine.low %v1486, %v1488
  %v1504 = vcombine.low %v1490, %v1492
  %1509 = vst [vmem:[%s7] sm:$0x77] %v1501
  %1510 = vst [vmem:[%s7 + $0x8] sm:$0x77] %v1502
  %1511 = vst [vmem:[%s7 + $0x10] sm:$0x77] %v1503
  %1512 = vst [vmem:[%s7 + $0x18] sm:$0x77] %v1504
  // Predicated region
  $region30: #{net_test.1} parent=0 // pred_check
    _
  $region31: #{net_test.1} parent=0 // pred_check_branch
    %1514 = sbr.rel (0) target = $region33
  $region32: #{net_test.1} parent=0 // pred_region
    _
  $region33: #{net_test.1} parent=0 // pred_fallthru
    _
  // Predicated region
  $region34: #{net_test.1} parent=0 // pred_check
    _
  $region35: #{net_test.1} parent=0 // pred_check_branch
    %1516 = sbr.rel (0) target = $region37
  $region36: #{net_test.1} parent=0 // pred_region
    _
  $region37: #{net_test.1} parent=0 // pred_fallthru
    _

</llo_original>
